<compile_context>
chip_gen: v5e
topology: v5e:2x2
jax: 0.10.0
libtpu: 0.0.40
codegen_flags: <defaults>
</compile_context>

<pallas_src>
import functools

import jax
import jax.numpy as jnp
from jax.experimental import pallas as pl
from jax.experimental.pallas import tpu as pltpu


def _round_up(x, m):
    return ((x + m - 1) // m) * m


def _tpu_budgets():
    """Returns (tile_budget_bytes, vmem_limit_bytes, tensorcores_per_chip)."""
    phys_vmem = 64 * 1024 * 1024  # conservative default = v7x per-TC VMEM
    try:
        info = pltpu.get_tpu_info()
        phys_vmem = int(getattr(info, "vmem_capacity_bytes", phys_vmem))
    except Exception:
        pass
    if phys_vmem > 96 * 1024 * 1024:
        # v5e / v6e: 128 MiB physical VMEM, 1 TensorCore per chip.
        return 64 * 1024 * 1024, 80 * 1024 * 1024, 1
    # v7x-class: 64 MiB VMEM per TensorCore, 2 TensorCores per chip.
    return 40 * 1024 * 1024, 48 * 1024 * 1024, 2


def _choose_tiles(nc, s, itemsize, tile_budget_bytes, num_cores):
    """Pick (row_tile, spatial_tile) for the (nc, s) -> (nc, 2) reduction."""
    nc_pad = _round_up(nc, 8)

    # Resident-VMEM cost per tile element: double-buffered input (2*itemsize)
    # plus one f32 temporary for the in-kernel upcast (matters for bf16).
    bytes_per_elem = 2 * itemsize + 4
    # Per-row fixed cost: two (rows,1) f32 accumulators (lane-padded to 128)
    # and the double-buffered (rows,2) output block (lane-padded).
    per_row_fixed = 2 * 128 * 4 + 2 * 128 * max(itemsize, 4)

    # Row cap: only on multi-TensorCore chips keep >= num_cores steps on the
    # leading 'parallel' axis so the grid can shard across cores. On 1-TC
    # chips (v5e/v6e) never shrink the tile for that.
    rows_cap = nc_pad
    if num_cores > 1 and nc_pad > 8:
        rows_cap = min(rows_cap, _round_up(-(-nc_pad // num_cores), 8))

    # Case A: the whole spatial axis fits in one tile even at the minimum of
    # 8 rows. Use ts = s exactly (block dim equal to the full array dim is
    # legal even when not a multiple of 128): single reduction step, no
    # padded columns, no tail mask. The whole tile is one contiguous DMA.
    row_bytes_full = s * bytes_per_elem + per_row_fixed
    if 8 * row_bytes_full <= tile_budget_bytes:
        rows = (tile_budget_bytes // row_bytes_full) // 8 * 8
        rows = max(min(rows, rows_cap), 8)
        return rows, s

    # Case B: spatial axis too large for one tile. Keep rows at the minimum
    # (8) and give the whole budget to ts (multiple of 128) so each per-row
    # DMA chunk is multi-MiB and contiguous. Only the last spatial tile may
    # need masking (gated with pl.when inside the kernel).
    ts = ((tile_budget_bytes // 8 - per_row_fixed) // bytes_per_elem) // 128 * 128
    ts = max(min(ts, _round_up(s, 128)), 128)
    return 8, ts


def _catavgmax_kernel(x_ref, out_ref, sum_acc, max_acc, *,
                      spatial_size, ts, has_tail):
    k = pl.program_id(1)
    nk = pl.num_programs(1)

    @pl.when(k == 0)
    def _init():
        sum_acc[...] = jnp.zeros_like(sum_acc)
        max_acc[...] = jnp.full_like(max_acc, -jnp.inf)

    # f32 accumulation regardless of input dtype; kernel is DMA-bound.
    x = x_ref[...].astype(jnp.float32)

    def _accumulate(x_sum, x_max):
        sum_acc[...] += jnp.sum(x_sum, axis=-1, keepdims=True)
        max_acc[...] = jnp.maximum(max_acc[...],
                                   jnp.max(x_max, axis=-1, keepdims=True))

    if has_tail:
        # Masking (iota + compare + 2x where) only on the final spatial tile;
        # every other step runs the unmasked path.
        @pl.when(k < nk - 1)
        def _full_tile():
            _accumulate(x, x)

        @pl.when(k == nk - 1)
        def _tail_tile():
            col = jax.lax.broadcasted_iota(jnp.int32, x.shape, 1) + k * ts
            valid = col < spatial_size
            _accumulate(jnp.where(valid, x, 0.0),
                        jnp.where(valid, x, -jnp.inf))
    else:
        _accumulate(x, x)

    @pl.when(k == nk - 1)
    def _finalize():
        avg = sum_acc[...] * jnp.float32(1.0 / spatial_size)
        # Single (rows, 2) store instead of two 1-lane sub-stores.
        out_ref[...] = jnp.concatenate(
            [avg, max_acc[...]], axis=-1).astype(out_ref.dtype)


def adaptive_catavgmax_pool3d(x, output_size: int = 1, *, _tiles=None):
    # TODO(synk): general output_size > 1 (windowed adaptive pooling) not
    # implemented; the module's global-pooling case (output_size=1) is what
    # the VGG-style head uses.
    assert output_size == 1, "only output_size=1 supported"
    assert jnp.issubdtype(x.dtype, jnp.floating), (
        f"catavgmax pool expects a floating dtype, got {x.dtype}")

    n, c, d, h, w = x.shape
    nc = n * c
    s = d * h * w
    xf = x.reshape(nc, s)  # contiguous reshape, no copy

    tile_budget, vmem_limit, num_cores = _tpu_budgets()
    if _tiles is None:
        rows, ts = _choose_tiles(nc, s, xf.dtype.itemsize, tile_budget,
                                 num_cores)
    else:
        rows, ts = _tiles  # test hook

    grid = (pl.cdiv(nc, rows), pl.cdiv(s, ts))
    has_tail = (s % ts) != 0

    kernel = functools.partial(
        _catavgmax_kernel, spatial_size=s, ts=ts, has_tail=has_tail)

    out = pl.pallas_call(
        kernel,
        out_shape=jax.ShapeDtypeStruct((nc, 2), x.dtype),
        grid=grid,
        in_specs=[pl.BlockSpec((rows, ts), lambda i, k: (i, k))],
        out_specs=pl.BlockSpec((rows, 2), lambda i, k: (i, 0)),
        scratch_shapes=[
            pltpu.VMEM((rows, 1), jnp.float32),  # running sum
            pltpu.VMEM((rows, 1), jnp.float32),  # running max
        ],
        compiler_params=pltpu.CompilerParams(
            dimension_semantics=("parallel", "arbitrary"),
            vmem_limit_bytes=vmem_limit,
        ),
    )(xf)

    # out[:, 0] = avg, out[:, 1] = max -> channel concat [avg | max].
    out = out.reshape(n, c, 2).transpose(0, 2, 1).reshape(n, 2 * c, 1, 1, 1)
    return out


def _reference(x):
    ref_avg = jnp.mean(x, axis=(2, 3, 4), keepdims=True)
    ref_max = jnp.max(x, axis=(2, 3, 4), keepdims=True)
    return jnp.concatenate([ref_avg, ref_max], axis=1)


if __name__ == "__main__":
    key = jax.random.PRNGKey(0)

    # Primary small NCDHW input: batch=2, channels=4, D=H=W=8.
    x = jax.random.normal(key, (2, 4, 8, 8, 8), dtype=jnp.float32)
    out = jax.block_until_ready(adaptive_catavgmax_pool3d(x, output_size=1))
    assert out.shape == (2, 8, 1, 1, 1), out.shape
    assert jnp.allclose(out, _reference(x), atol=1e-5, rtol=1e-5)

    # Ragged shape: partial row block (NC=6 < 8) and a spatial size that is
    # not a multiple of 128 (handled as a single full-extent tile, no mask).
    x2 = jax.random.normal(jax.random.PRNGKey(1), (2, 3, 5, 7, 6),
                           dtype=jnp.float32)
    out2 = jax.block_until_ready(adaptive_catavgmax_pool3d(x2, output_size=1))
    assert out2.shape == (2, 6, 1, 1, 1), out2.shape
    assert jnp.allclose(out2, _reference(x2), atol=1e-5, rtol=1e-5)

    # Forced small tiles: exercises the multi-step spatial reduction with the
    # pl.when-gated tail mask and a partial row block (grid = (3, 2) here).
    x3 = jax.random.normal(jax.random.PRNGKey(2), (2, 10, 5, 7, 6),
                           dtype=jnp.float32)
    out3 = jax.block_until_ready(
        adaptive_catavgmax_pool3d(x3, output_size=1, _tiles=(8, 128)))
    assert out3.shape == (2, 20, 1, 1, 1), out3.shape
    assert jnp.allclose(out3, _reference(x3), atol=1e-5, rtol=1e-5)

    print("KERNEL_OK")
</pallas_src>

<mosaic_0001>
module attributes {stable_mosaic.version = 11 : i64} {
  func.func @_catavgmax_kernel(%arg0: i32, %arg1: i32, %arg2: memref<8x512xf32, #tpu.memory_space<vmem>>, %arg3: memref<8x2xf32, #tpu.memory_space<vmem>>, %arg4: memref<8x1xf32, #tpu.memory_space<vmem>>, %arg5: memref<8x1xf32, #tpu.memory_space<vmem>>) attributes {dimension_semantics = [#tpu.dimension_semantics<parallel>, #tpu.dimension_semantics<arbitrary>], iteration_bounds = array<i64: 1, 1>, scalar_prefetch = 0 : i64, scratch_operands = 2 : i64, tpu.core_type = #tpu.core_type<tc>, window_params = [{transform_indices = @transform_0, window_bounds = array<i64: 8, 512>}, {transform_indices = @transform_1, window_bounds = array<i64: 8, 2>}]} {
    %c0_i32 = arith.constant 0 : i32
    %0 = arith.cmpi eq, %arg1, %c0_i32 : i32
    %1 = arith.extui %0 : i1 to i32
    %c0_i32_0 = arith.constant 0 : i32
    %2 = arith.cmpi ne, %1, %c0_i32_0 : i32
    scf.if %2 {
      %cst_13 = arith.constant 0.000000e+00 : f32
      %17 = vector.broadcast %cst_13 : f32 to vector<8x1xf32>
      %c0_14 = arith.constant 0 : index
      %c0_15 = arith.constant 0 : index
      %18 = vector.load %arg4[%c0_14, %c0_15] : memref<8x1xf32, #tpu.memory_space<vmem>>, vector<8x1xf32>
      tpu.vector_store %arg4[%c0_14, %c0_15], %17 {strides = array<i32>} : memref<8x1xf32, #tpu.memory_space<vmem>>, vector<8x1xf32>,
      %cst_16 = arith.constant 0xFF800000 : f32
      %19 = vector.broadcast %cst_16 : f32 to vector<8x1xf32>
      %c0_17 = arith.constant 0 : index
      %c0_18 = arith.constant 0 : index
      %20 = vector.load %arg5[%c0_17, %c0_18] : memref<8x1xf32, #tpu.memory_space<vmem>>, vector<8x1xf32>
      tpu.vector_store %arg5[%c0_17, %c0_18], %19 {strides = array<i32>} : memref<8x1xf32, #tpu.memory_space<vmem>>, vector<8x1xf32>,
    } else {
    }
    %c0 = arith.constant 0 : index
    %c0_1 = arith.constant 0 : index
    %3 = vector.load %arg2[%c0, %c0_1] : memref<8x512xf32, #tpu.memory_space<vmem>>, vector<8x512xf32>
    %c0_2 = arith.constant 0 : index
    %c0_3 = arith.constant 0 : index
    %4 = vector.load %arg4[%c0_2, %c0_3] : memref<8x1xf32, #tpu.memory_space<vmem>>, vector<8x1xf32>
    %cst = arith.constant dense<0.000000e+00> : vector<8xf32>
    %5 = vector.multi_reduction <add>, %3, %cst [1] : vector<8x512xf32> to vector<8xf32>
    %6 = vector.shape_cast %5 : vector<8xf32> to vector<8x1xf32>
    %7 = arith.addf %4, %6 : vector<8x1xf32>
    %c0_4 = arith.constant 0 : index
    %c0_5 = arith.constant 0 : index
    %8 = vector.load %arg4[%c0_4, %c0_5] : memref<8x1xf32, #tpu.memory_space<vmem>>, vector<8x1xf32>
    tpu.vector_store %arg4[%c0_4, %c0_5], %7 {strides = array<i32>} : memref<8x1xf32, #tpu.memory_space<vmem>>, vector<8x1xf32>,
    %c0_6 = arith.constant 0 : index
    %c0_7 = arith.constant 0 : index
    %9 = vector.load %arg5[%c0_6, %c0_7] : memref<8x1xf32, #tpu.memory_space<vmem>>, vector<8x1xf32>
    %cst_8 = arith.constant dense<0xFF800000> : vector<8xf32>
    %10 = vector.multi_reduction <maximumf>, %3, %cst_8 [1] : vector<8x512xf32> to vector<8xf32>
    %11 = vector.shape_cast %10 : vector<8xf32> to vector<8x1xf32>
    %12 = arith.maximumf %9, %11 : vector<8x1xf32>
    %c0_9 = arith.constant 0 : index
    %c0_10 = arith.constant 0 : index
    %13 = vector.load %arg5[%c0_9, %c0_10] : memref<8x1xf32, #tpu.memory_space<vmem>>, vector<8x1xf32>
    tpu.vector_store %arg5[%c0_9, %c0_10], %12 {strides = array<i32>} : memref<8x1xf32, #tpu.memory_space<vmem>>, vector<8x1xf32>,
    %c0_i32_11 = arith.constant 0 : i32
    %14 = arith.cmpi eq, %arg1, %c0_i32_11 : i32
    %15 = arith.extui %14 : i1 to i32
    %c0_i32_12 = arith.constant 0 : i32
    %16 = arith.cmpi ne, %15, %c0_i32_12 : i32
    scf.if %16 {
      %c0_13 = arith.constant 0 : index
      %c0_14 = arith.constant 0 : index
      %17 = vector.load %arg4[%c0_13, %c0_14] : memref<8x1xf32, #tpu.memory_space<vmem>>, vector<8x1xf32>
      %cst_15 = arith.constant 0.001953125 : f32
      %18 = vector.broadcast %cst_15 : f32 to vector<8x1xf32>
      %19 = arith.mulf %17, %18 : vector<8x1xf32>
      %c0_16 = arith.constant 0 : index
      %c0_17 = arith.constant 0 : index
      %20 = vector.load %arg5[%c0_16, %c0_17] : memref<8x1xf32, #tpu.memory_space<vmem>>, vector<8x1xf32>
      %21 = tpu.concatenate %19, %20 in 1 : vector<8x1xf32>, vector<8x1xf32> -> vector<8x2xf32>
      %c0_18 = arith.constant 0 : index
      %c0_19 = arith.constant 0 : index
      %22 = vector.load %arg3[%c0_18, %c0_19] : memref<8x2xf32, #tpu.memory_space<vmem>>, vector<8x2xf32>
      tpu.vector_store %arg3[%c0_18, %c0_19], %21 {strides = array<i32>} : memref<8x2xf32, #tpu.memory_space<vmem>>, vector<8x2xf32>,
    } else {
    }
    return
  }
  func.func @transform_0(%arg0: i32, %arg1: i32) -> (i32, i32) {
    %c0_i32 = arith.constant 0 : i32
    return %arg0, %arg1 : i32, i32
  }
  func.func @transform_1(%arg0: i32, %arg1: i32) -> (i32, i32) {
    %c0_i32 = arith.constant 0 : i32
    %c0_i32_0 = arith.constant 0 : i32
    return %arg0, %c0_i32 : i32, i32
  }
}

</mosaic_0001>

<llo_original>
// kernel: tpu_custom_call.1
$region0: #{tpu_custom_call.1}
  #allocation0 [shape = 'u32[]', space=smem, size = 0x4, offset = 0x4, fixed_abs, tag = 'smem constant byte address 0x4 - core index']
  #allocation1 [shape = 'u32[72,128]{1,0:T(1,128)}', space=vmem, size = 0x9000, scoped, tag = 'internal scratch']
  #allocation2 [shape = 'f32[8,1]{1,0:T(8,128)}', space=vmem, size = 0x1000, scoped, tag = 'scratch operand']
  #allocation3 [shape = 'f32[8,1]{1,0:T(8,128)}', space=vmem, size = 0x1000, scoped, tag = 'scratch operand']
  %s0 = inlined_call_operand.hbm [shape: f32[8,512], index: 0, kind: input, shape index: {}]
  %s1 = inlined_call_operand.vmem [shape: f32[8,2], index: 1, kind: output, shape index: {}]
  %s2 = sld [smem:[#allocation0]]
  $region26: #{tpu_custom_call.1} parent=0
    _
  %s4 = ssub.s32 1, %s2
  %s5 = scalar_select 0, %s4, %s2
  $region1: #{tpu_custom_call.1} parent=0
    #allocation4 [shape = 'u8[16384]{0}', space=vmem, size = 0x4000, scoped, tag = 'input window, operand 0, single buffered']
    #allocation5 [shape = 's32[1]{0}', space=sflag, size = 0x4, scoped, tag = 'scoped memory for tpu_custom_call.1']
    %6 = vsyncpa [#allocation5], 0
    // Predicated region
    $region2: #{tpu_custom_call.1} parent=1 // pred_check
      _
    $region3: #{tpu_custom_call.1} parent=1 // pred_check_branch
      %8 = sbr.rel (0) target = $region5
    $region4: #{tpu_custom_call.1} parent=1 // pred_region
      %10 = vsyncadd [#allocation5], 0
      %s12 = sshll.u32 %s0, 4
      %s13 = int_to_ptr.hbm [resolvable:$true] %s12
      %s14 = sshll.u32 [#allocation4], 4
      %s15 = int_to_ptr.vmem [resolvable:$true] %s14
      %17 = dma.hbm_to_vmem [thread:$0]  %s13, 512, %s15, [#allocation5]
    $region5: #{tpu_custom_call.1} parent=1 // pred_fallthru
      _
    // Predicated region
    $region6: #{tpu_custom_call.1} parent=1 // pred_check
      _
    $region7: #{tpu_custom_call.1} parent=1 // pred_check_branch
      %19 = sbr.rel (0) target = $region9
    $region8: #{tpu_custom_call.1} parent=1 // pred_region
      %21 = dma.done [#allocation5], 512
    $region9: #{tpu_custom_call.1} parent=1 // pred_fallthru
      _
    %p22 = scmp.eq.s32.totalorder 0, 0
    // Predicated region
    $region10: #{tpu_custom_call.1} parent=1 // pred_check
      %p23 = pneg %p22
    $region11: #{tpu_custom_call.1} parent=1 // pred_check_branch
      %25 = sbr.rel (%p23) target = $region13
    $region12: #{tpu_custom_call.1} parent=1 // pred_region
      %vm26 = vcmask 7168
      %27 = vst.msk [vmem:[#allocation2] sm:$0xff] %vm26, 0.0
      %28 = vst.msk [vmem:[#allocation3] sm:$0xff] %vm26, -inf
    $region13: #{tpu_custom_call.1} parent=1 // pred_fallthru
      _
    %v29 = vld [vmem:[#allocation4] sm:$0xff]
    %v30 = vld [vmem:[#allocation4 + $0x8] sm:$0xff]
    %v31 = vld [vmem:[#allocation4 + $0x10] sm:$0xff]
    %v32 = vld [vmem:[#allocation4 + $0x18] sm:$0xff]
    %v33 = vld [vmem:[#allocation2] sm:$0xff]
    %v34 = vadd.f32 %v29, %v30
    %v35 = vadd.f32 %v34, %v31
    %v36 = vadd.f32 %v35, %v32
    %37 = vadd.xlane.f32.xlu0 %v36
    %v38 = vpop.xlane.xlu0 %37
    %v39 = vadd.f32 %v33, %v38
    %vm40 = vcmask 7168
    %41 = vst.msk [vmem:[#allocation2] sm:$0xff] %vm40, %v39
    %v42 = vld [vmem:[#allocation3] sm:$0xff]
    %v43 = vmax.f32 %v29, %v30
    %v44 = vmax.f32 %v31, %v32
    %v45 = vmax.f32 %v43, %v44
    %46 = vmax.xlane.f32.xlu0 %v45
    %v47 = vpop.xlane.xlu0 %46
    %v48 = vmax.f32 %v42, %v47
    %49 = vst.msk [vmem:[#allocation3] sm:$0xff] %vm40, %v48
    // Predicated region
    $region14: #{tpu_custom_call.1} parent=1 // pred_check
      %p50 = pneg %p22
    $region15: #{tpu_custom_call.1} parent=1 // pred_check_branch
      %52 = sbr.rel (%p50) target = $region17
    $region16: #{tpu_custom_call.1} parent=1 // pred_region
      %v53 = vld [vmem:[#allocation2] sm:$0xff]
      %v54 = vmul.f32 %v53, 0.001953125
      %v55 = vld [vmem:[#allocation3] sm:$0xff]
      %57 = vrot.lane.b32.xlu0 %v55, 1
      %v58 = vpop.permute.xlu0 %57
      %v60 = vsel %vm40, %v54, %v58
      %vm61 = vcmask 15360
      %62 = vst.msk [vmem:[%s1] sm:$0xff] %vm61, %v60
    $region17: #{tpu_custom_call.1} parent=1 // pred_fallthru
      _
    // Predicated region
    $region18: #{tpu_custom_call.1} parent=1 // pred_check
      _
    $region19: #{tpu_custom_call.1} parent=1 // pred_check_branch
      %64 = sbr.rel (0) target = $region21
    $region20: #{tpu_custom_call.1} parent=1 // pred_region
      _
    $region21: #{tpu_custom_call.1} parent=1 // pred_fallthru
      _
    // Predicated region
    $region22: #{tpu_custom_call.1} parent=1 // pred_check
      _
    $region23: #{tpu_custom_call.1} parent=1 // pred_check_branch
      %66 = sbr.rel (0) target = $region25
    $region24: #{tpu_custom_call.1} parent=1 // pred_region
      _
    $region25: #{tpu_custom_call.1} parent=1 // pred_fallthru
      _
    %67 = vsyncpa [#allocation5], 1

</llo_original>
